<compile_context>
chip_gen: v7x
topology: tpu7x:2x2x1
jax: 0.10.0
libtpu: 0.0.40
codegen_flags: <defaults>
</compile_context>

<pallas_src>
import functools
import types

import jax
import jax.numpy as jnp
from jax.experimental import pallas as pl
from jax.experimental.pallas import tpu as pltpu


# Cast L2-normalized class tokens to bf16 for the two MXU matmuls in the
# encoder-feature loss.  Worthwhile at realistic (B, D) on v6e/v7x; kept off at
# these toy sizes so the run stays bit-close to the f32 reference.
USE_BF16_MXU = False


def _vmem_spec():
    return pl.BlockSpec(memory_space=pltpu.MemorySpace.VMEM)


# -----------------------------------------------------------------------------
# Standalone cross-entropy kernel (used for the 'none' path / base criterion).
# Single invocation, no grid, whole arrays in VMEM, lane-friendly output.
# -----------------------------------------------------------------------------
def _ce_kernel(logits_ref, labels_ref, out_ref):
    logits = logits_ref[...].astype(jnp.float32)            # (B, C)
    labels = labels_ref[...]                                # (B, 1) int32
    B, C = logits.shape
    m = jnp.max(logits, axis=-1, keepdims=True)
    lse = m + jnp.log(jnp.sum(jnp.exp(logits - m), axis=-1, keepdims=True))
    col = jax.lax.broadcasted_iota(jnp.int32, (B, C), 1)
    onehot = (col == labels).astype(jnp.float32)
    picked = jnp.sum(onehot * logits, axis=-1, keepdims=True)
    lane = jax.lax.broadcasted_iota(jnp.int32, (1, 128), 1)
    out_ref[...] = jnp.where(lane == 0, jnp.mean(lse - picked), 0.0)


def cross_entropy_loss(logits, labels):
    B, _ = logits.shape
    labels2d = labels.astype(jnp.int32).reshape(B, 1)
    out = pl.pallas_call(
        _ce_kernel,
        out_shape=jax.ShapeDtypeStruct((1, 128), jnp.float32),
        in_specs=[_vmem_spec(), _vmem_spec()],
        out_specs=_vmem_spec(),
    )(logits, labels2d)
    return out[0, 0]


# -----------------------------------------------------------------------------
# Fused distillation kernel: one launch, grid over the P layer pairs.
#   p == 0       : base CE + logit distillation (soft/hard), write lanes 0/1
#   every p      : per-pair encoder-feature loss accumulated into lane 2
# All weighting ((1-alpha), alpha, beta/P) is folded in here.
# -----------------------------------------------------------------------------
def _fused_distill_kernel(sid_ref, tid_ref, st_ref, labels_ref, cs_ref, ct_ref,
                          out_ref, *, B, tau, distillation_type,
                          w_base, w_kd, w_enc, use_bf16_mxu):
    del sid_ref, tid_ref  # consumed by the index_maps (scalar prefetch)
    p = pl.program_id(0)
    lane = jax.lax.broadcasted_iota(jnp.int32, (1, 128), 1)

    @pl.when(p == 0)
    def _():
        logits = st_ref[...].astype(jnp.float32)   # (2B, C): [student; teacher]
        s = logits[:B, :]
        t = logits[B:, :]
        labels = labels_ref[...]                   # (B, 1) int32
        C = s.shape[-1]
        col = jax.lax.broadcasted_iota(jnp.int32, (B, C), 1)

        # ---- base cross-entropy: mean_b( logsumexp(s_b) - s_b[label_b] ) ----
        m_s = jnp.max(s, axis=-1, keepdims=True)
        e_s = jnp.exp(s - m_s)
        lse_s = m_s + jnp.log(jnp.sum(e_s, axis=-1, keepdims=True))
        onehot = (col == labels).astype(jnp.float32)
        picked = jnp.sum(onehot * s, axis=-1, keepdims=True)
        base_loss = jnp.mean(lse_s - picked)

        # ---- logit distillation ----
        if distillation_type == "soft":
            # kl_div(log_softmax(s/T), log_softmax(t/T), log_target=True,
            #        reduction='batchmean') * T^2
            inv_tau = 1.0 / tau
            ss = s * inv_tau
            tt = t * inv_tau
            m1 = m_s * inv_tau   # row max commutes with positive scaling: reuse
            ls = ss - (m1 + jnp.log(jnp.sum(jnp.exp(ss - m1), axis=-1, keepdims=True)))
            m2 = jnp.max(tt, axis=-1, keepdims=True)
            e2 = jnp.exp(tt - m2)
            sum2 = jnp.sum(e2, axis=-1, keepdims=True)
            lt = tt - (m2 + jnp.log(sum2))
            p_t = e2 * (1.0 / sum2)               # exp(lt) without another exp pass
            kd_loss = (jnp.sum(p_t * (lt - ls)) / B) * (tau * tau)
        else:
            # hard: cross_entropy(student_logits, argmax(teacher_logits)).
            # Tie-break: first maximal column, matching torch.argmax.
            t_max = jnp.max(t, axis=-1, keepdims=True)
            first_idx = jnp.min(jnp.where(t == t_max, col, C), axis=-1, keepdims=True)
            onehot_t = (col == first_idx).astype(jnp.float32)
            picked_t = jnp.sum(onehot_t * s, axis=-1, keepdims=True)
            kd_loss = jnp.mean(lse_s - picked_t)  # reuses lse_s

        out_ref[...] = jnp.where(lane == 0, w_base * base_loss,
                                 jnp.where(lane == 1, w_kd * kd_loss, 0.0))

    # ---- encoder-layer feature distillation for pair p ----
    cs = cs_ref[...].astype(jnp.float32)           # (B, Ds) selected student cls tokens
    ct = ct_ref[...].astype(jnp.float32)           # (B, Dt) selected teacher cls tokens
    # F.normalize(dim=-1): x / max(||x||, 1e-12) == x * rsqrt(max(||x||^2, 1e-24))
    cs = cs * jax.lax.rsqrt(jnp.maximum(jnp.sum(cs * cs, axis=-1, keepdims=True), 1e-24))
    ct = ct * jax.lax.rsqrt(jnp.maximum(jnp.sum(ct * ct, axis=-1, keepdims=True), 1e-24))
    mm_dtype = jnp.bfloat16 if use_bf16_mxu else jnp.float32
    cs_m = cs.astype(mm_dtype)
    ct_m = ct.astype(mm_dtype)
    # Gram reassociation: rec = (cs cs^T) ct  == cs (cs^T ct); only a (B, B)
    # intermediate and no explicit transpose.
    gram = jax.lax.dot_general(cs_m, cs_m, (((1,), (1,)), ((), ())),
                               preferred_element_type=jnp.float32)   # (B, B)
    rec = jnp.dot(gram.astype(mm_dtype), ct_m,
                  preferred_element_type=jnp.float32)                # (B, Dt)
    diff = ct - rec
    # w_enc already contains beta / P, so a plain accumulate is the final value.
    out_ref[...] += jnp.where(lane == 2, w_enc * jnp.mean(diff * diff), 0.0)


def fused_distillation_losses(student_logits, teacher_logits, labels,
                              class_tokens_s, class_tokens_t,
                              layer_ids_s, layer_ids_t, *,
                              tau, distillation_type, alpha, beta):
    B, C = student_logits.shape
    L_s, Bs, Ds = class_tokens_s.shape
    L_t, Bt, Dt = class_tokens_t.shape
    P = len(layer_ids_s)
    assert len(layer_ids_t) == P and Bs == B and Bt == B

    # One (2B, C) stacked logits array -> a single input DMA for both logit sets.
    st = jnp.concatenate([student_logits.astype(jnp.float32),
                          teacher_logits.astype(jnp.float32)], axis=0)
    labels2d = labels.astype(jnp.int32).reshape(B, 1)

    # Scalar-prefetch layer-id tables drive the (L, B, D) layer selection:
    # the selected (B, D) slice is DMA'd straight out of HBM, no wrapper gather.
    sid = jnp.asarray(layer_ids_s, jnp.int32)
    tid = jnp.asarray(layer_ids_t, jnp.int32)

    kernel = functools.partial(
        _fused_distill_kernel,
        B=B, tau=float(tau), distillation_type=distillation_type,
        w_base=float(1.0 - alpha), w_kd=float(alpha),
        w_enc=float(beta) / float(P),
        use_bf16_mxu=USE_BF16_MXU)

    grid_spec = pltpu.PrefetchScalarGridSpec(
        num_scalar_prefetch=2,
        grid=(P,),
        in_specs=[
            # Constant block index -> resident across the P grid steps.
            pl.BlockSpec((2 * B, C), lambda p, sid, tid: (0, 0)),
            pl.BlockSpec((B, 1), lambda p, sid, tid: (0, 0)),
            # Per-pair layer selection via the prefetched id tables.
            pl.BlockSpec((None, B, Ds), lambda p, sid, tid: (sid[p], 0, 0)),
            pl.BlockSpec((None, B, Dt), lambda p, sid, tid: (tid[p], 0, 0)),
        ],
        out_specs=pl.BlockSpec((1, 128), lambda p, sid, tid: (0, 0)),
    )

    out = pl.pallas_call(
        kernel,
        out_shape=jax.ShapeDtypeStruct((1, 128), jnp.float32),
        grid_spec=grid_spec,
        compiler_params=pltpu.CompilerParams(
            dimension_semantics=("arbitrary",),
            vmem_limit_bytes=32 * 1024 * 1024),
    )(sid, tid, st, labels2d, class_tokens_s, class_tokens_t)
    return out[0, 0], out[0, 1], out[0, 2]


# -----------------------------------------------------------------------------
# DistillationLoss (JAX/Pallas version of the PyTorch module)
# -----------------------------------------------------------------------------
class DistillationLoss:
    def __init__(self, base_criterion, teacher_model, args):
        assert args.distillation_type in ["none", "soft", "hard"]
        self.base_criterion = base_criterion
        self.teacher_model = teacher_model
        self.distillation_type = args.distillation_type
        self.tau = args.distillation_tau
        self.layer_ids_s = tuple(args.s_id)
        self.layer_ids_t = tuple(args.t_id)
        self.alpha = args.distillation_alpha
        self.beta = args.distillation_beta
        # Single jit over teacher forward + fused kernel + scalar slicing:
        # one dispatch per training step instead of many tiny XLA ops.
        self._forward_jit = jax.jit(self._forward)

    def _forward(self, inputs, student_outputs, class_tokens_s, labels):
        if self.distillation_type == "none":
            return self.base_criterion(student_outputs, labels)

        # teacher runs with no grad
        teacher_outputs, class_tokens_t = self.teacher_model(inputs)
        teacher_outputs = jax.lax.stop_gradient(teacher_outputs)
        class_tokens_t = jax.lax.stop_gradient(class_tokens_t)

        loss_base, loss_logit_dist, loss_fea_dist = fused_distillation_losses(
            student_outputs, teacher_outputs, labels,
            class_tokens_s, class_tokens_t,
            self.layer_ids_s, self.layer_ids_t,
            tau=self.tau, distillation_type=self.distillation_type,
            alpha=self.alpha, beta=self.beta)

        # The fused kernel computes the weighted CE base loss; honor a custom
        # base criterion if one was supplied.
        if self.base_criterion is not cross_entropy_loss:
            loss_base = (1.0 - self.alpha) * self.base_criterion(student_outputs, labels)

        return loss_base, loss_logit_dist, loss_fea_dist

    def __call__(self, inputs, outputs, labels):
        student_outputs, class_tokens_s = outputs[0], outputs[1]
        return self._forward_jit(inputs, student_outputs, class_tokens_s, labels)


# -----------------------------------------------------------------------------
# Deterministic synthetic teacher stand-in (original teacher is an external
# nn.Module; here a linear projection of the flattened NCHW input).
# -----------------------------------------------------------------------------
class SyntheticTeacher:
    def __init__(self, key, in_features, num_classes, num_layers, dim):
        k1, k2 = jax.random.split(key)
        self.W = 0.02 * jax.random.normal(k1, (in_features, num_classes), jnp.float32)
        self.V = 0.02 * jax.random.normal(k2, (in_features, num_layers * dim), jnp.float32)
        self.num_layers = num_layers
        self.dim = dim

    def __call__(self, x):
        B = x.shape[0]
        xf = x.reshape(B, -1).astype(jnp.float32)
        logits = xf @ self.W                                   # (B, num_classes)
        toks = (xf @ self.V).reshape(B, self.num_layers, self.dim)
        toks = jnp.transpose(toks, (1, 0, 2))                  # (L_t, B, D)
        return logits, toks


if __name__ == "__main__":
    # small, deterministic problem sizes
    B, C_in, H, W = 8, 4, 16, 16
    num_classes = 128
    D = 128          # class-token embedding dim
    L_s, L_t = 4, 12 # student / teacher encoder depths
    s_id, t_id = [1, 3], [5, 11]

    key = jax.random.PRNGKey(0)
    k_in, k_so, k_cs, k_lab, k_teacher = jax.random.split(key, 5)

    inputs = jax.random.normal(k_in, (B, C_in, H, W), jnp.float32)      # NCHW
    student_outputs = jax.random.normal(k_so, (B, num_classes), jnp.float32)
    class_tokens_s = jax.random.normal(k_cs, (L_s, B, D), jnp.float32)
    labels = jax.random.randint(k_lab, (B,), 0, num_classes, jnp.int32)

    teacher = SyntheticTeacher(k_teacher, C_in * H * W, num_classes, L_t, D)

    def make_args(kind):
        return types.SimpleNamespace(
            distillation_type=kind, distillation_tau=2.0,
            distillation_alpha=0.5, distillation_beta=1.0,
            s_id=s_id, t_id=t_id)

    # --- pure-JAX reference (same math as the PyTorch module) ---
    t_logits, t_toks = teacher(inputs)
    ls_full = jax.nn.log_softmax(student_outputs, axis=-1)
    ref_base = -jnp.mean(ls_full[jnp.arange(B), labels])
    T = 2.0
    ls = jax.nn.log_softmax(student_outputs / T, axis=-1)
    lt = jax.nn.log_softmax(t_logits / T, axis=-1)
    ref_kd_soft = jnp.sum(jnp.exp(lt) * (lt - ls)) / B * (T * T)
    ref_kd_hard = -jnp.mean(ls_full[jnp.arange(B), jnp.argmax(t_logits, axis=-1)])
    enc_terms = []
    for i_s, i_t in zip(s_id, t_id):
        cs_r = class_tokens_s[i_s]
        ct_r = t_toks[i_t]
        cs_r = cs_r / jnp.maximum(jnp.linalg.norm(cs_r, axis=-1, keepdims=True), 1e-12)
        ct_r = ct_r / jnp.maximum(jnp.linalg.norm(ct_r, axis=-1, keepdims=True), 1e-12)
        corr = cs_r.T @ ct_r
        rec = cs_r @ corr
        enc_terms.append(jnp.mean((ct_r - rec) ** 2))
    ref_enc = sum(enc_terms) / len(enc_terms)

    for kind, ref_kd in [("soft", ref_kd_soft), ("hard", ref_kd_hard)]:
        args = make_args(kind)
        criterion = DistillationLoss(cross_entropy_loss, teacher, args)
        lb, ll, lf = criterion(inputs, (student_outputs, class_tokens_s), labels)
        jax.block_until_ready((lb, ll, lf))
        ref = jnp.array([(1.0 - args.distillation_alpha) * ref_base,
                         args.distillation_alpha * ref_kd,
                         args.distillation_beta * ref_enc], jnp.float32)
        got = jnp.array([lb, ll, lf], jnp.float32)
        assert jnp.allclose(got, ref, rtol=1e-3, atol=1e-4), (kind, got, ref)

    # 'none' path: base criterion only
    criterion_none = DistillationLoss(cross_entropy_loss, teacher, make_args("none"))
    base_only = criterion_none(inputs, (student_outputs, class_tokens_s), labels)
    jax.block_until_ready(base_only)
    assert jnp.allclose(base_only, ref_base, rtol=1e-3, atol=1e-4), (base_only, ref_base)

    print("KERNEL_OK")
</pallas_src>

<mosaic_0001>
module attributes {stable_mosaic.version = 11 : i64} {
  func.func @_fused_distill_kernel(%arg0: i32, %arg1: memref<2xi32, #tpu.memory_space<smem>>, %arg2: memref<2xi32, #tpu.memory_space<smem>>, %arg3: memref<16x128xf32, #tpu.memory_space<vmem>>, %arg4: memref<8x1xi32, #tpu.memory_space<vmem>>, %arg5: memref<1x8x128xf32, #tpu.memory_space<vmem>>, %arg6: memref<1x8x128xf32, #tpu.memory_space<vmem>>, %arg7: memref<1x128xf32, #tpu.memory_space<vmem>>) attributes {dimension_semantics = [#tpu.dimension_semantics<arbitrary>], iteration_bounds = array<i64: 2>, scalar_prefetch = 2 : i64, scratch_operands = 0 : i64, tpu.core_type = #tpu.core_type<tc>, window_params = [{pipeline_mode = #tpu.pipeline_mode<synchronous>, transform_indices = @transform_0, window_bounds = array<i64: 16, 128>}, {pipeline_mode = #tpu.pipeline_mode<synchronous>, transform_indices = @transform_1, window_bounds = array<i64: 8, 1>}, {transform_indices = @transform_2, window_bounds = array<i64: 1, 8, 128>}, {transform_indices = @transform_3, window_bounds = array<i64: 1, 8, 128>}, {pipeline_mode = #tpu.pipeline_mode<synchronous>, transform_indices = @transform_4, window_bounds = array<i64: 1, 128>}]} {
    %0 = tpu.iota {dimensions = array<i32: 1>} : vector<1x128xi32>
    %c0_i32 = arith.constant 0 : i32
    %1 = arith.cmpi eq, %arg0, %c0_i32 : i32
    %2 = arith.extui %1 : i1 to i32
    %c0_i32_0 = arith.constant 0 : i32
    %3 = arith.cmpi ne, %2, %c0_i32_0 : i32
    scf.if %3 {
      %c0_19 = arith.constant 0 : index
      %c0_20 = arith.constant 0 : index
      %42 = vector.load %arg3[%c0_19, %c0_20] : memref<16x128xf32, #tpu.memory_space<vmem>>, vector<16x128xf32>
      %43 = vector.extract_strided_slice %42 {offsets = [0, 0], sizes = [8, 128], strides = [1, 1]} : vector<16x128xf32> to vector<8x128xf32>
      %44 = vector.extract_strided_slice %42 {offsets = [8, 0], sizes = [8, 128], strides = [1, 1]} : vector<16x128xf32> to vector<8x128xf32>
      %c0_21 = arith.constant 0 : index
      %c0_22 = arith.constant 0 : index
      %45 = vector.load %arg4[%c0_21, %c0_22] : memref<8x1xi32, #tpu.memory_space<vmem>>, vector<8x1xi32>
      %46 = tpu.iota {dimensions = array<i32: 1>} : vector<8x128xi32>
      %cst_23 = arith.constant dense<0xFF800000> : vector<8xf32>
      %47 = vector.multi_reduction <maximumf>, %43, %cst_23 [1] : vector<8x128xf32> to vector<8xf32>
      %48 = vector.shape_cast %47 : vector<8xf32> to vector<8x1xf32>
      %49 = vector.broadcast %48 : vector<8x1xf32> to vector<8x128xf32>
      %50 = arith.subf %43, %49 : vector<8x128xf32>
      %51 = math.exp %50 : vector<8x128xf32>
      %cst_24 = arith.constant dense<0.000000e+00> : vector<8xf32>
      %52 = vector.multi_reduction <add>, %51, %cst_24 [1] : vector<8x128xf32> to vector<8xf32>
      %53 = vector.shape_cast %52 : vector<8xf32> to vector<8x1xf32>
      %54 = math.log %53 : vector<8x1xf32>
      %55 = arith.addf %48, %54 : vector<8x1xf32>
      %56 = vector.broadcast %45 : vector<8x1xi32> to vector<8x128xi32>
      %57 = arith.cmpi eq, %46, %56 : vector<8x128xi32>
      %58 = arith.extui %57 : vector<8x128xi1> to vector<8x128xi32>
      %59 = arith.sitofp %58 : vector<8x128xi32> to vector<8x128xf32>
      %60 = arith.mulf %59, %43 : vector<8x128xf32>
      %cst_25 = arith.constant dense<0.000000e+00> : vector<8xf32>
      %61 = vector.multi_reduction <add>, %60, %cst_25 [1] : vector<8x128xf32> to vector<8xf32>
      %62 = vector.shape_cast %61 : vector<8xf32> to vector<8x1xf32>
      %63 = arith.subf %55, %62 : vector<8x1xf32>
      %64 = vector.shape_cast %63 : vector<8x1xf32> to vector<1x8x1xf32>
      %cst_26 = arith.constant dense<0.000000e+00> : vector<1xf32>
      %65 = vector.multi_reduction <add>, %64, %cst_26 [1, 2] : vector<1x8x1xf32> to vector<1xf32>
      %66 = vector.shape_cast %65 : vector<1xf32> to vector<1x1x1xf32>
      %67 = vector.extract %66[0, 0, 0] : f32 from vector<1x1x1xf32>
      %cst_27 = arith.constant 8.000000e+00 : f32
      %68 = arith.divf %67, %cst_27 : f32
      %cst_28 = arith.constant 5.000000e-01 : f32
      %69 = vector.broadcast %cst_28 : f32 to vector<8x128xf32>
      %70 = arith.mulf %43, %69 : vector<8x128xf32>
      %cst_29 = arith.constant 5.000000e-01 : f32
      %71 = vector.broadcast %cst_29 : f32 to vector<8x128xf32>
      %72 = arith.mulf %44, %71 : vector<8x128xf32>
      %cst_30 = arith.constant 5.000000e-01 : f32
      %73 = vector.broadcast %cst_30 : f32 to vector<8x1xf32>
      %74 = arith.mulf %48, %73 : vector<8x1xf32>
      %75 = vector.broadcast %74 : vector<8x1xf32> to vector<8x128xf32>
      %76 = arith.subf %70, %75 : vector<8x128xf32>
      %77 = math.exp %76 : vector<8x128xf32>
      %cst_31 = arith.constant dense<0.000000e+00> : vector<8xf32>
      %78 = vector.multi_reduction <add>, %77, %cst_31 [1] : vector<8x128xf32> to vector<8xf32>
      %79 = vector.shape_cast %78 : vector<8xf32> to vector<8x1xf32>
      %80 = math.log %79 : vector<8x1xf32>
      %81 = arith.addf %74, %80 : vector<8x1xf32>
      %82 = vector.broadcast %81 : vector<8x1xf32> to vector<8x128xf32>
      %83 = arith.subf %70, %82 : vector<8x128xf32>
      %cst_32 = arith.constant dense<0xFF800000> : vector<8xf32>
      %84 = vector.multi_reduction <maximumf>, %72, %cst_32 [1] : vector<8x128xf32> to vector<8xf32>
      %85 = vector.shape_cast %84 : vector<8xf32> to vector<8x1xf32>
      %86 = vector.broadcast %85 : vector<8x1xf32> to vector<8x128xf32>
      %87 = arith.subf %72, %86 : vector<8x128xf32>
      %88 = math.exp %87 : vector<8x128xf32>
      %cst_33 = arith.constant dense<0.000000e+00> : vector<8xf32>
      %89 = vector.multi_reduction <add>, %88, %cst_33 [1] : vector<8x128xf32> to vector<8xf32>
      %90 = vector.shape_cast %89 : vector<8xf32> to vector<8x1xf32>
      %91 = math.log %90 : vector<8x1xf32>
      %92 = arith.addf %85, %91 : vector<8x1xf32>
      %93 = vector.broadcast %92 : vector<8x1xf32> to vector<8x128xf32>
      %94 = arith.subf %72, %93 : vector<8x128xf32>
      %cst_34 = arith.constant 1.000000e+00 : f32
      %95 = vector.broadcast %cst_34 : f32 to vector<8x1xf32>
      %96 = arith.divf %95, %90 : vector<8x1xf32>
      %97 = vector.broadcast %96 : vector<8x1xf32> to vector<8x128xf32>
      %98 = arith.mulf %88, %97 : vector<8x128xf32>
      %99 = arith.subf %94, %83 : vector<8x128xf32>
      %100 = arith.mulf %98, %99 : vector<8x128xf32>
      %101 = vector.shape_cast %100 : vector<8x128xf32> to vector<1x8x128xf32>
      %cst_35 = arith.constant dense<0.000000e+00> : vector<1xf32>
      %102 = vector.multi_reduction <add>, %101, %cst_35 [1, 2] : vector<1x8x128xf32> to vector<1xf32>
      %103 = vector.shape_cast %102 : vector<1xf32> to vector<1x1x1xf32>
      %104 = vector.extract %103[0, 0, 0] : f32 from vector<1x1x1xf32>
      %cst_36 = arith.constant 8.000000e+00 : f32
      %105 = arith.divf %104, %cst_36 : f32
      %cst_37 = arith.constant 4.000000e+00 : f32
      %106 = arith.mulf %105, %cst_37 : f32
      %c0_i32_38 = arith.constant 0 : i32
      %107 = vector.broadcast %c0_i32_38 : i32 to vector<1x128xi32>
      %108 = arith.cmpi eq, %0, %107 : vector<1x128xi32>
      %cst_39 = arith.constant 5.000000e-01 : f32
      %109 = arith.mulf %cst_39, %68 : f32
      %c1_i32 = arith.constant 1 : i32
      %110 = vector.broadcast %c1_i32 : i32 to vector<1x128xi32>
      %111 = arith.cmpi eq, %0, %110 : vector<1x128xi32>
      %cst_40 = arith.constant 5.000000e-01 : f32
      %112 = arith.mulf %cst_40, %106 : f32
      %cst_41 = arith.constant 0.000000e+00 : f32
      %113 = vector.broadcast %112 : f32 to vector<1x128xf32>
      %114 = vector.broadcast %cst_41 : f32 to vector<1x128xf32>
      %115 = arith.select %111, %113, %114 : vector<1x128xi1>, vector<1x128xf32>
      %116 = vector.broadcast %109 : f32 to vector<1x128xf32>
      %117 = arith.select %108, %116, %115 : vector<1x128xi1>, vector<1x128xf32>
      %c0_42 = arith.constant 0 : index
      %c0_43 = arith.constant 0 : index
      %118 = vector.load %arg7[%c0_42, %c0_43] : memref<1x128xf32, #tpu.memory_space<vmem>>, vector<1x128xf32>
      tpu.vector_store %arg7[%c0_42, %c0_43], %117 {strides = array<i32>} : memref<1x128xf32, #tpu.memory_space<vmem>>, vector<1x128xf32>,
    } else {
    }
    %c0 = arith.constant 0 : index
    %c0_1 = arith.constant 0 : index
    %c0_2 = arith.constant 0 : index
    %4 = vector.load %arg5[%c0, %c0_1, %c0_2] : memref<1x8x128xf32, #tpu.memory_space<vmem>>, vector<1x8x128xf32>
    %5 = vector.shape_cast %4 : vector<1x8x128xf32> to vector<8x128xf32>
    %c0_3 = arith.constant 0 : index
    %c0_4 = arith.constant 0 : index
    %c0_5 = arith.constant 0 : index
    %6 = vector.load %arg6[%c0_3, %c0_4, %c0_5] : memref<1x8x128xf32, #tpu.memory_space<vmem>>, vector<1x8x128xf32>
    %7 = vector.shape_cast %6 : vector<1x8x128xf32> to vector<8x128xf32>
    %8 = arith.mulf %5, %5 : vector<8x128xf32>
    %cst = arith.constant dense<0.000000e+00> : vector<8xf32>
    %9 = vector.multi_reduction <add>, %8, %cst [1] : vector<8x128xf32> to vector<8xf32>
    %10 = vector.shape_cast %9 : vector<8xf32> to vector<8x1xf32>
    %cst_6 = arith.constant 1.000000e-24 : f32
    %11 = vector.broadcast %cst_6 : f32 to vector<8x1xf32>
    %12 = arith.maximumf %10, %11 : vector<8x1xf32>
    %13 = math.rsqrt %12 : vector<8x1xf32>
    %14 = vector.broadcast %13 : vector<8x1xf32> to vector<8x128xf32>
    %15 = arith.mulf %5, %14 : vector<8x128xf32>
    %16 = arith.mulf %7, %7 : vector<8x128xf32>
    %cst_7 = arith.constant dense<0.000000e+00> : vector<8xf32>
    %17 = vector.multi_reduction <add>, %16, %cst_7 [1] : vector<8x128xf32> to vector<8xf32>
    %18 = vector.shape_cast %17 : vector<8xf32> to vector<8x1xf32>
    %cst_8 = arith.constant 1.000000e-24 : f32
    %19 = vector.broadcast %cst_8 : f32 to vector<8x1xf32>
    %20 = arith.maximumf %18, %19 : vector<8x1xf32>
    %21 = math.rsqrt %20 : vector<8x1xf32>
    %22 = vector.broadcast %21 : vector<8x1xf32> to vector<8x128xf32>
    %23 = arith.mulf %7, %22 : vector<8x128xf32>
    %cst_9 = arith.constant dense<0.000000e+00> : vector<8x8xf32>
    %24 = tpu.matmul %15, %15, %cst_9 {dimension_numbers = #tpu.dot_dimension_numbers<[1], [1], [0], [0], [0, 0, 1, 0], [], []>} : vector<8x128xf32>, vector<8x128xf32>, vector<8x8xf32> -> vector<8x8xf32>
    %cst_10 = arith.constant dense<0.000000e+00> : vector<8x128xf32>
    %25 = tpu.matmul %24, %23, %cst_10 {dimension_numbers = #tpu.dot_dimension_numbers<[1], [0], [0], [1], [0, 0, 1, 1], [], []>} : vector<8x8xf32>, vector<8x128xf32>, vector<8x128xf32> -> vector<8x128xf32>
    %26 = arith.subf %23, %25 : vector<8x128xf32>
    %c0_11 = arith.constant 0 : index
    %c0_12 = arith.constant 0 : index
    %27 = vector.load %arg7[%c0_11, %c0_12] : memref<1x128xf32, #tpu.memory_space<vmem>>, vector<1x128xf32>
    %c2_i32 = arith.constant 2 : i32
    %28 = vector.broadcast %c2_i32 : i32 to vector<1x128xi32>
    %29 = arith.cmpi eq, %0, %28 : vector<1x128xi32>
    %30 = arith.mulf %26, %26 : vector<8x128xf32>
    %31 = vector.shape_cast %30 : vector<8x128xf32> to vector<1x8x128xf32>
    %cst_13 = arith.constant dense<0.000000e+00> : vector<1xf32>
    %32 = vector.multi_reduction <add>, %31, %cst_13 [1, 2] : vector<1x8x128xf32> to vector<1xf32>
    %33 = vector.shape_cast %32 : vector<1xf32> to vector<1x1x1xf32>
    %34 = vector.extract %33[0, 0, 0] : f32 from vector<1x1x1xf32>
    %cst_14 = arith.constant 1.024000e+03 : f32
    %35 = arith.divf %34, %cst_14 : f32
    %cst_15 = arith.constant 5.000000e-01 : f32
    %36 = arith.mulf %cst_15, %35 : f32
    %cst_16 = arith.constant 0.000000e+00 : f32
    %37 = vector.broadcast %36 : f32 to vector<1x128xf32>
    %38 = vector.broadcast %cst_16 : f32 to vector<1x128xf32>
    %39 = arith.select %29, %37, %38 : vector<1x128xi1>, vector<1x128xf32>
    %40 = arith.addf %27, %39 : vector<1x128xf32>
    %c0_17 = arith.constant 0 : index
    %c0_18 = arith.constant 0 : index
    %41 = vector.load %arg7[%c0_17, %c0_18] : memref<1x128xf32, #tpu.memory_space<vmem>>, vector<1x128xf32>
    tpu.vector_store %arg7[%c0_17, %c0_18], %40 {strides = array<i32>} : memref<1x128xf32, #tpu.memory_space<vmem>>, vector<1x128xf32>,
    return
  }
  func.func @transform_0(%arg0: i32, %arg1: memref<2xi32, #tpu.memory_space<smem>>, %arg2: memref<2xi32, #tpu.memory_space<smem>>) -> (i32, i32) {
    %c0_i32 = arith.constant 0 : i32
    %c0_i32_0 = arith.constant 0 : i32
    %c0_i32_1 = arith.constant 0 : i32
    return %c0_i32, %c0_i32_0 : i32, i32
  }
  func.func @transform_1(%arg0: i32, %arg1: memref<2xi32, #tpu.memory_space<smem>>, %arg2: memref<2xi32, #tpu.memory_space<smem>>) -> (i32, i32) {
    %c0_i32 = arith.constant 0 : i32
    %c0_i32_0 = arith.constant 0 : i32
    %c0_i32_1 = arith.constant 0 : i32
    return %c0_i32, %c0_i32_0 : i32, i32
  }
  func.func @transform_2(%arg0: i32, %arg1: memref<2xi32, #tpu.memory_space<smem>>, %arg2: memref<2xi32, #tpu.memory_space<smem>>) -> (i32, i32, i32) {
    %0 = arith.index_cast %arg0 : i32 to index
    %1 = memref.load %arg1[%0] : memref<2xi32, #tpu.memory_space<smem>>
    %c0_i32 = arith.constant 0 : i32
    %c0_i32_0 = arith.constant 0 : i32
    %c0_i32_1 = arith.constant 0 : i32
    return %1, %c0_i32, %c0_i32_0 : i32, i32, i32
  }
  func.func @transform_3(%arg0: i32, %arg1: memref<2xi32, #tpu.memory_space<smem>>, %arg2: memref<2xi32, #tpu.memory_space<smem>>) -> (i32, i32, i32) {
    %0 = arith.index_cast %arg0 : i32 to index
    %1 = memref.load %arg2[%0] : memref<2xi32, #tpu.memory_space<smem>>
    %c0_i32 = arith.constant 0 : i32
    %c0_i32_0 = arith.constant 0 : i32
    %c0_i32_1 = arith.constant 0 : i32
    return %1, %c0_i32, %c0_i32_0 : i32, i32, i32
  }
  func.func @transform_4(%arg0: i32, %arg1: memref<2xi32, #tpu.memory_space<smem>>, %arg2: memref<2xi32, #tpu.memory_space<smem>>) -> (i32, i32) {
    %c0_i32 = arith.constant 0 : i32
    %c0_i32_0 = arith.constant 0 : i32
    %c0_i32_1 = arith.constant 0 : i32
    return %c0_i32, %c0_i32_0 : i32, i32
  }
}

</mosaic_0001>

<llo_original>
// kernel: _forward.1
$region0: #{_forward.1}
  #allocation0 [shape = 'u32[]', space=smem, size = 0x4, offset = 0x4, fixed_abs, tag = 'smem constant byte address 0x4 - core index']
  #allocation1 [shape = 'u32[144,128]{1,0:T(1,128)}', space=vmem, size = 0x12000, scoped, tag = 'internal scratch']
  #allocation2 [shape = 's32[1]{0}', space=sflag, size = 0x4, scoped, tag = 'scoped memory for _forward.1']
  #allocation3 [shape = 'u8[512]{0}', space=smem, size = 0x200, scoped, tag = 'prefetched SMEM operand 0']
  #allocation4 [shape = 'u8[512]{0}', space=smem, size = 0x200, scoped, tag = 'prefetched SMEM operand 1']
  %s0 = inlined_call_operand.vmem [shape: s32[2], index: 0, kind: input, shape index: {}]
  %s1 = inlined_call_operand.vmem [shape: s32[2], index: 1, kind: input, shape index: {}]
  %s2 = inlined_call_operand.vmem [shape: f32[16,128], index: 2, kind: input, shape index: {}]
  %s3 = inlined_call_operand.vmem [shape: s32[8,1], index: 3, kind: input, shape index: {}]
  %s4 = inlined_call_operand.vmem [shape: f32[4,8,128], index: 4, kind: input, shape index: {}]
  %s5 = inlined_call_operand.vmem [shape: f32[12,8,128], index: 5, kind: input, shape index: {}]
  %s6 = inlined_call_operand.vmem [shape: f32[1,128], index: 6, kind: output, shape index: {}]
  %s7 = sld [smem:[#allocation0]]
  $region53: #{_forward.1} parent=0
    _
  %s9 = ssub.s32 1, %s7
  %s10 = scalar_select 0, %s9, %s7
  %s11 = sshll.u32 %s0, 4
  %s12 = int_to_ptr.vmem [resolvable:$true] %s11
  %14 = dma.vmem_to_smem %s12, 16, [#allocation3], [#allocation2]
  %s15 = sshll.u32 %s1, 4
  %s16 = int_to_ptr.vmem [resolvable:$true] %s15
  %18 = dma.vmem_to_smem %s16, 16, [#allocation4], [#allocation2]
  %19 = dma.done [#allocation2], 32
  %20 = sfence
  loop: start=0, step=1, limit=4
  $region2: #{_forward.1} parent=0 // loop_pre_header
    _
  $region3: #{_forward.1} parent=0 // loop_header
    %s22 = sphi 0, %s26
    %p23 = scmp.ge.s32.totalorder %s22, 4
    %s30 = sphi 0, %s30
    %s32 = sphi 0, %s30
    %s33 = sphi 0, %s32
    %s47 = sphi 0, %s33
    %s51 = sphi 0, %s51
    %s53 = sphi 0, %s51
    %s54 = sphi 0, %s53
    %s68 = sphi 0, %s54
    %s76 = sphi 0, %s78
    %s79 = sphi 0, %s76
    %s80 = sphi 0, %s79
    %s96 = sphi 0, %s80
    %s104 = sphi 0, %s106
    %s107 = sphi 0, %s104
    %s108 = sphi 0, %s107
    %s124 = sphi 0, %s108
    %s128 = sphi 0, %s128
    %s130 = sphi 0, %s128
    %s131 = sphi 0, %s130
    %s145 = sphi 0, %s131
  $region4: #{_forward.1} parent=0 // loop_header_branch
    %25 = sbr.rel (%p23) target = $region8
  $region5: #{_forward.1} parent=0 // loop_body
    %s27 = ssub.s32 %s22, 1
    %s28 = ssub.s32 %s22, 2
    %s29 = sadd.s32 %s22, 1
    %s31 = sadd.s32 %s30, 1
    %p34 = scmp.eq.s32.totalorder %s22, 1
    %p35 = scmp.ne.s32.totalorder %s30, %s32
    %p36 = scmp.eq.s32.totalorder %s22, 0
    %p37 = por %p35, %p36
    %p38 = scmp.ne.s32.totalorder %s30, %s32
    %p39 = scmp.eq.s32.totalorder %s27, 1
    %p40 = por %p38, %p39
    %p41 = scmp.ne.s32.totalorder %s32, %s33
    %p42 = scmp.eq.s32.totalorder %s27, 0
    %p43 = por %p41, %p42
    %p44 = scmp.ne.s32.totalorder %s32, %s33
    %p45 = scmp.eq.s32.totalorder %s28, 1
    %p46 = por %p44, %p45
    %p48 = scmp.ne.s32.totalorder %s33, %s47
    %p49 = scmp.eq.s32.totalorder %s28, 0
    %p50 = por %p48, %p49
    %s52 = sadd.s32 %s51, 1
    %p55 = scmp.eq.s32.totalorder %s22, 1
    %p56 = scmp.ne.s32.totalorder %s51, %s53
    %p57 = scmp.eq.s32.totalorder %s22, 0
    %p58 = por %p56, %p57
    %p59 = scmp.ne.s32.totalorder %s51, %s53
    %p60 = scmp.eq.s32.totalorder %s27, 1
    %p61 = por %p59, %p60
    %p62 = scmp.ne.s32.totalorder %s53, %s54
    %p63 = scmp.eq.s32.totalorder %s27, 0
    %p64 = por %p62, %p63
    %p65 = scmp.ne.s32.totalorder %s53, %s54
    %p66 = scmp.eq.s32.totalorder %s28, 1
    %p67 = por %p65, %p66
    %p69 = scmp.ne.s32.totalorder %s54, %s68
    %p70 = scmp.eq.s32.totalorder %s28, 0
    %p71 = por %p69, %p70
    %s72 = sld [smem:[#allocation3 + %s22]]
    %s73 = sld [smem:[#allocation3 + %s29]]
    %s74 = ssub.s32 %s72, %s73
    %p75 = scmp.eq.s32.totalorder %s74, 0
    %s77 = sadd.s32 %s76, 1
    %s78 = scalar_select %p75, %s76, %s77
    %p81 = pneg %p75
    %p82 = scmp.eq.s32.totalorder %s22, 1
    %p83 = por %p81, %p82
    %p84 = scmp.ne.s32.totalorder %s76, %s79
    %p85 = scmp.eq.s32.totalorder %s22, 0
    %p86 = por %p84, %p85
    %p87 = scmp.ne.s32.totalorder %s76, %s79
    %p88 = scmp.eq.s32.totalorder %s27, 1
    %p89 = por %p87, %p88
    %p90 = scmp.ne.s32.totalorder %s79, %s80
    %p91 = scmp.eq.s32.totalorder %s27, 0
    %p92 = por %p90, %p91
    %p93 = scmp.ne.s32.totalorder %s79, %s80
    %p94 = scmp.eq.s32.totalorder %s28, 1
    %p95 = por %p93, %p94
    %p97 = scmp.ne.s32.totalorder %s80, %s96
    %p98 = scmp.eq.s32.totalorder %s28, 0
    %p99 = por %p97, %p98
    %s100 = sld [smem:[#allocation4 + %s22]]
    %s101 = sld [smem:[#allocation4 + %s29]]
    %s102 = ssub.s32 %s100, %s101
    %p103 = scmp.eq.s32.totalorder %s102, 0
    %s105 = sadd.s32 %s104, 1
    %s106 = scalar_select %p103, %s104, %s105
    %p109 = pneg %p103
    %p110 = scmp.eq.s32.totalorder %s22, 1
    %p111 = por %p109, %p110
    %p112 = scmp.ne.s32.totalorder %s104, %s107
    %p113 = scmp.eq.s32.totalorder %s22, 0
    %p114 = por %p112, %p113
    %p115 = scmp.ne.s32.totalorder %s104, %s107
    %p116 = scmp.eq.s32.totalorder %s27, 1
    %p117 = por %p115, %p116
    %p118 = scmp.ne.s32.totalorder %s107, %s108
    %p119 = scmp.eq.s32.totalorder %s27, 0
    %p120 = por %p118, %p119
    %p121 = scmp.ne.s32.totalorder %s107, %s108
    %p122 = scmp.eq.s32.totalorder %s28, 1
    %p123 = por %p121, %p122
    %p125 = scmp.ne.s32.totalorder %s108, %s124
    %p126 = scmp.eq.s32.totalorder %s28, 0
    %p127 = por %p125, %p126
    %s129 = sadd.s32 %s128, 1
    %p132 = scmp.eq.s32.totalorder %s22, 1
    %p133 = scmp.ne.s32.totalorder %s128, %s130
    %p134 = scmp.eq.s32.totalorder %s22, 0
    %p135 = por %p133, %p134
    %p136 = scmp.ne.s32.totalorder %s128, %s130
    %p137 = scmp.eq.s32.totalorder %s27, 1
    %p138 = por %p136, %p137
    %p139 = scmp.ne.s32.totalorder %s130, %s131
    %p140 = scmp.eq.s32.totalorder %s27, 0
    %p141 = por %p139, %p140
    %p142 = scmp.ne.s32.totalorder %s130, %s131
    %p143 = scmp.eq.s32.totalorder %s28, 1
    %p144 = por %p142, %p143
    %p146 = scmp.ne.s32.totalorder %s131, %s145
    %p147 = scmp.eq.s32.totalorder %s28, 0
    %p148 = por %p146, %p147
    %p149 = scmp.le.s32.totalorder 1, %s22
    %p150 = scmp.lt.s32.totalorder %s22, 3
    %p151 = pnand %p149, %p150
    %p152 = pneg %p151
    // Predicated region
    $region9: #{_forward.1} parent=5 // pred_check
      _
    $region10: #{_forward.1} parent=5 // pred_check_branch
      %154 = sbr.rel (%p151) target = $region12
    $region11: #{_forward.1} parent=5 // pred_region
      %s155 = ssub.s32 %s22, 1
      // Predicated region
      $region13: #{_forward.1} parent=11 // pred_check
        %p156 = pneg %p43
      $region14: #{_forward.1} parent=11 // pred_check_branch
        %158 = sbr.rel (%p156) target = $region16
      $region15: #{_forward.1} parent=11 // pred_region
        _
      $region16: #{_forward.1} parent=11 // pred_fallthru
        _
      // Predicated region
      $region17: #{_forward.1} parent=11 // pred_check
        %p159 = pneg %p64
      $region18: #{_forward.1} parent=11 // pred_check_branch
        %161 = sbr.rel (%p159) target = $region20
      $region19: #{_forward.1} parent=11 // pred_region
        _
      $region20: #{_forward.1} parent=11 // pred_fallthru
        _
    $region12: #{_forward.1} parent=5 // pred_fallthru
      _
    %p162 = scmp.lt.s32.totalorder %s22, 2
    // Predicated region
    $region21: #{_forward.1} parent=5 // pred_check
      %p163 = pneg %p162
    $region22: #{_forward.1} parent=5 // pred_check_branch
      %165 = sbr.rel (%p163) target = $region24
    $region23: #{_forward.1} parent=5 // pred_region
      // Predicated region
      $region25: #{_forward.1} parent=23 // pred_check
        %p166 = pneg %p86
      $region26: #{_forward.1} parent=23 // pred_check_branch
        %168 = sbr.rel (%p166) target = $region28
      $region27: #{_forward.1} parent=23 // pred_region
        %s169 = sld [smem:[#allocation3 + %s22]]
        %p170 = scmp.lt.s32.totalorder %s169, 3
        %s171 = scalar_select %p170, %s169, 3
        %s172 = smul.addr %s171, 8
        %s173 = scalar_lea.vmem %s4, %s172
        %s174 = sld [smem:[#allocation3 + %s22]]
      $region28: #{_forward.1} parent=23 // pred_fallthru
        _
      // Predicated region
      $region29: #{_forward.1} parent=23 // pred_check
        %p175 = pneg %p114
      $region30: #{_forward.1} parent=23 // pred_check_branch
        %177 = sbr.rel (%p175) target = $region32
      $region31: #{_forward.1} parent=23 // pred_region
        %s178 = sld [smem:[#allocation4 + %s22]]
        %p179 = scmp.lt.s32.totalorder %s178, 11
        %s180 = scalar_select %p179, %s178, 11
        %s181 = smul.addr %s180, 8
        %s182 = scalar_lea.vmem %s5, %s181
        %s183 = sld [smem:[#allocation4 + %s22]]
      $region32: #{_forward.1} parent=23 // pred_fallthru
        _
    $region24: #{_forward.1} parent=5 // pred_fallthru
      _
    %p184 = scmp.le.s32.totalorder 1, %s22
    %p185 = scmp.lt.s32.totalorder %s22, 3
    %p186 = pnand %p184, %p185
    %p187 = pneg %p186
    // Predicated region
    $region33: #{_forward.1} parent=5 // pred_check
      _
    $region34: #{_forward.1} parent=5 // pred_check_branch
      %189 = sbr.rel (%p186) target = $region36
    $region35: #{_forward.1} parent=5 // pred_region
      %s190 = ssub.s32 %s22, 1
      %p191 = pneg %p43
      %p192 = pneg %p40
      %p193 = pneg %p64
      %p194 = pneg %p61
      %s195 = sld [smem:[#allocation3 + %s27]]
      %p196 = scmp.lt.s32.totalorder %s195, 3
      %s197 = scalar_select %p196, %s195, 3
      %s198 = smul.addr %s197, 8
      %s199 = scalar_lea.vmem %s4, %s198
      %p200 = pneg %p92
      %p201 = pneg %p89
      %s202 = sld [smem:[#allocation4 + %s27]]
      %p203 = scmp.lt.s32.totalorder %s202, 11
      %s204 = scalar_select %p203, %s202, 11
      %s205 = smul.addr %s204, 8
      %s206 = scalar_lea.vmem %s5, %s205
      %p207 = pneg %p120
      %p208 = pneg %p117
      %p209 = pneg %p141
      %p210 = pneg %p138
      %s211 = sld [smem:[#allocation3 + %s27]]
      %p212 = scmp.lt.s32.totalorder %s211, 3
      %s213 = scalar_select %p212, %s211, 3
      %s214 = smul.addr %s213, 8
      %s215 = scalar_lea.vmem %s4, %s214
      %s216 = sld [smem:[#allocation3 + %s27]]
      %s217 = sld [smem:[#allocation4 + %s27]]
      %p218 = scmp.lt.s32.totalorder %s217, 11
      %s219 = scalar_select %p218, %s217, 11
      %s220 = smul.addr %s219, 8
      %s221 = scalar_lea.vmem %s5, %s220
      %s222 = sld [smem:[#allocation4 + %s27]]
      %v223 = vlaneseq
      %v224 = vand.u32 %v223, 127
      %p225 = scmp.eq.s32.totalorder %s27, 0
      // Predicated region
      $region37: #{_forward.1} parent=35 // pred_check
        %p226 = pneg %p225
      $region38: #{_forward.1} parent=35 // pred_check_branch
        %228 = sbr.rel (%p226) target = $region40
      $region39: #{_forward.1} parent=35 // pred_region
        %v229 = vld [vmem:[%s2] sm:$0xff]
        %v230 = vld [vmem:[%s2 + $0x8] sm:$0xff]
        %v231 = vld [vmem:[%s3] sm:$0xff]
        %232 = vmax.xlane.f32.xlu0 %v229
        %v233 = vpop.xlane.xlu0 %232
        %v234 = vsub.f32 %v229, %v233
        %v235 = vmul.f32 %v234, 1.442695
        %v236 = vpow.pop %v235
        %237 = vadd.xlane.f32.xlu0 %v236
        %v238 = vpop.xlane.xlu0 %237
        %v239 = vlog2.pop %v238
        %v240 = vmul.f32 %v239, 0.6931472
        %v241 = vadd.f32 %v233, %v240
        %242 = vset.pattern.permute.xlu0 0
        %243 = vperm.xlu0 %242, %v231
        %v244 = vpop.permute.xlu0 %243
        %vm245 = vcmp.eq.s32.totalorder %v224, %v244
        %v246 = vsel %vm245, 1, 0
        %v247 = vcvt.s32.f32 %v246
        %v248 = vmul.f32 %v247, %v229
        %249 = vadd.xlane.f32.xlu0 %v248
        %v250 = vpop.xlane.xlu0 %249
        %v251 = vsub.f32 %v241, %v250
        %vm252 = vcmask 7168
        %v253 = vsel %vm252, %v251, 0.0
        %254 = vadd.xlane.f32.xlu0 %v253
        %v255 = vpop.xlane.xlu0 %254
        %v256 = vrot.slane %v255, 4
        %v257 = vadd.f32 %v255, %v256
        %v258 = vrot.slane %v257, 2
        %v259 = vadd.f32 %v257, %v258
        %v260 = vrot.slane %v259, 1
        %v261 = vadd.f32 %v259, %v260
        %s262 = vtos %v261
        %v263 = vrcp.pop 8.0
        %s264 = vtos %v263
        %s265 = smul.f32 %s262, %s264
        %v266 = vmul.f32 %v229, 0.5
        %v267 = vmul.f32 %v230, 0.5
        %v268 = vmul.f32 %v233, 0.5
        %v269 = vsub.f32 %v266, %v268
        %v270 = vmul.f32 %v269, 1.442695
        %v271 = vpow.pop %v270
        %272 = vadd.xlane.f32.xlu0 %v271
        %v273 = vpop.xlane.xlu0 %272
        %v274 = vlog2.pop %v273
        %v275 = vmul.f32 %v274, 0.6931472
        %v276 = vadd.f32 %v268, %v275
        %v277 = vsub.f32 %v266, %v276
        %278 = vmax.xlane.f32.xlu0 %v267
        %v279 = vpop.xlane.xlu0 %278
        %v280 = vsub.f32 %v267, %v279
        %v281 = vmul.f32 %v280, 1.442695
        %v282 = vpow.pop %v281
        %283 = vadd.xlane.f32.xlu0 %v282
        %v284 = vpop.xlane.xlu0 %283
        %v285 = vlog2.pop %v284
        %v286 = vmul.f32 %v285, 0.6931472
        %v287 = vadd.f32 %v279, %v286
        %v288 = vsub.f32 %v267, %v287
        %v289 = vrcp.pop %v284
        %v290 = vmul.f32 1.0, %v289
        %v291 = vmul.f32 %v282, %v290
        %v292 = vsub.f32 %v288, %v277
        %v293 = vmul.f32 %v291, %v292
        %294 = vadd.xlane.f32.xlu0 %v293
        %v295 = vpop.xlane.xlu0 %294
        %v296 = vrot.slane %v295, 4
        %v297 = vadd.f32 %v295, %v296
        %v298 = vrot.slane %v297, 2
        %v299 = vadd.f32 %v297, %v298
        %v300 = vrot.slane %v299, 1
        %v301 = vadd.f32 %v299, %v300
        %s302 = vtos %v301
        %v303 = vrcp.pop 8.0
        %s304 = vtos %v303
        %s305 = smul.f32 %s302, %s304
        %s306 = smul.f32 %s305, 4.0
        %vm307 = vcmp.eq.s32.totalorder %v224, 0
        %s308 = smul.f32 %s265, 0.5
        %vm309 = vcmp.eq.s32.totalorder %v224, 1
        %s310 = smul.f32 %s306, 0.5
        %v311 = vstv %s310
        %v312 = vsel %vm309, %v311, 0.0
        %v313 = vstv %s308
        %v314 = vsel %vm307, %v313, %v312
        %315 = vst [vmem:[%s6] sm:$0x1] %v314
      $region40: #{_forward.1} parent=35 // pred_fallthru
        _
      %v316 = vld [vmem:[%s215] sm:$0xff]
      %v317 = vld [vmem:[%s221] sm:$0xff]
      %v318 = vmul.f32 %v316, %v316
      %319 = vadd.xlane.f32.xlu0 %v318
      %v320 = vpop.xlane.xlu0 %319
      %v321 = vmax.f32 %v320, 1e-24
      %v322 = vrsqrt.pop %v321
      %v323 = vmul.f32 %v316, %v322
      %v324 = vmul.f32 %v317, %v317
      %325 = vadd.xlane.f32.xlu0 %v324
      %v326 = vpop.xlane.xlu0 %325
      %v327 = vmax.f32 %v326, 1e-24
      %v328 = vrsqrt.pop %v327
      %v329 = vmul.f32 %v317, %v328
      %330 = vmatprep.subr.mxu0 0.0
      %331 = vmatpush1.xpose.msra.mxu0 %v323
      %332 = vmatprep.subr.mxu0 0.0
      %333 = vmatpush1.xpose.msra.mxu0 0.0
      %334 = vmatprep.subr.mxu0 0.0
      %335 = vmatpush1.xpose.msra.mxu0 0.0
      %336 = vmatprep.subr.mxu0 0.0
      %337 = vmatpush1.xpose.msra.mxu0 0.0
      %338 = vmatprep.subr.mxu0 0.0
      %339 = vmatpush1.xpose.msra.mxu0 0.0
      %340 = vmatprep.subr.mxu0 0.0
      %341 = vmatpush1.xpose.msra.mxu0 0.0
      %342 = vmatprep.subr.mxu0 0.0
      %343 = vmatpush1.xpose.msra.mxu0 0.0
      %344 = vmatprep.subr.mxu0 0.0
      %345 = vmatpush1.xpose.msra.mxu0 0.0
      %346 = vmatprep.subr.mxu0 0.0
      %347 = vmatpush1.xpose.msra.mxu0 0.0
      %348 = vmatprep.subr.mxu0 0.0
      %349 = vmatpush1.xpose.msra.mxu0 0.0
      %350 = vmatprep.subr.mxu0 0.0
      %351 = vmatpush1.xpose.msra.mxu0 0.0
      %352 = vmatprep.subr.mxu0 0.0
      %353 = vmatpush1.xpose.msra.mxu0 0.0
      %354 = vmatprep.subr.mxu0 0.0
      %355 = vmatpush1.xpose.msra.mxu0 0.0
      %356 = vmatprep.subr.mxu0 0.0
      %357 = vmatpush1.xpose.msra.mxu0 0.0
      %358 = vmatprep.subr.mxu0 0.0
      %359 = vmatpush1.xpose.msra.mxu0 0.0
      %360 = vmatprep.subr.mxu0 0.0
      %361 = vmatpush1.xpose.msra.mxu0 0.0
      %362 = vmatprep.subr.mxu0 0.0
      %363 = vmatpush1.xpose.msra.mxu0 0.0
      %364 = vmatprep.subr.mxu0 0.0
      %365 = vmatpush1.xpose.msra.mxu0 0.0
      %366 = vmatprep.subr.mxu0 0.0
      %367 = vmatpush1.xpose.msra.mxu0 0.0
      %368 = vmatprep.subr.mxu0 0.0
      %369 = vmatpush1.xpose.msra.mxu0 0.0
      %370 = vmatprep.subr.mxu0 0.0
      %371 = vmatpush1.xpose.msra.mxu0 0.0
      %372 = vmatprep.subr.mxu0 0.0
      %373 = vmatpush1.xpose.msra.mxu0 0.0
      %374 = vmatprep.subr.mxu0 0.0
      %375 = vmatpush1.xpose.msra.mxu0 0.0
      %376 = vmatprep.subr.mxu0 0.0
      %377 = vmatpush1.xpose.msra.mxu0 0.0
      %378 = vmatprep.subr.mxu0 0.0
      %379 = vmatpush1.xpose.msra.mxu0 0.0
      %380 = vmatprep.subr.mxu0 0.0
      %381 = vmatpush1.xpose.msra.mxu0 0.0
      %382 = vmatprep.subr.mxu0 0.0
      %383 = vmatpush1.xpose.msra.mxu0 0.0
      %384 = vmatprep.subr.mxu0 0.0
      %385 = vmatpush1.xpose.msra.mxu0 0.0
      %386 = vmatprep.subr.mxu0 0.0
      %387 = vmatpush1.xpose.msra.mxu0 0.0
      %388 = vmatprep.subr.mxu0 0.0
      %389 = vmatpush1.xpose.msra.mxu0 0.0
      %390 = vmatprep.subr.mxu0 0.0
      %391 = vmatpush1.xpose.msra.mxu0 0.0
      %392 = vmatprep.subr.mxu0 0.0
      %393 = vmatpush1.xpose.msra.mxu0 0.0
      %394 = vmatprep.mubr.f32.mxu0 0.0
      %395 = vmatmul.mubr.f32.gmra.mrb[0].mxu0 %v323
      %v396 = vpop.f32.mrb[0].mxu0
      %v397 = vadd.f32 0.0, %v396
      %v398 = vpop.f32.mrb[0].mxu0
      %399 = vdwg.mxu0
      %vm400 = vcmask 64512
      %v402 = vsel %vm400, %v397, 0
      %404 = vmatprep.subr.mxu0 0.0
      %405 = vmatpush1.msra.mxu0 %v329
      %406 = vmatprep.subr.mxu0 0.0
      %407 = vmatpush1.msra.mxu0 0.0
      %408 = vmatprep.subr.mxu0 0.0
      %409 = vmatpush1.msra.mxu0 0.0
      %410 = vmatprep.subr.mxu0 0.0
      %411 = vmatpush1.msra.mxu0 0.0
      %412 = vmatprep.subr.mxu0 0.0
      %413 = vmatpush1.msra.mxu0 0.0
      %414 = vmatprep.subr.mxu0 0.0
      %415 = vmatpush1.msra.mxu0 0.0
      %416 = vmatprep.subr.mxu0 0.0
      %417 = vmatpush1.msra.mxu0 0.0
      %418 = vmatprep.subr.mxu0 0.0
      %419 = vmatpush1.msra.mxu0 0.0
      %420 = vmatprep.subr.mxu0 0.0
      %421 = vmatpush1.msra.mxu0 0.0
      %422 = vmatprep.subr.mxu0 0.0
      %423 = vmatpush1.msra.mxu0 0.0
      %424 = vmatprep.subr.mxu0 0.0
      %425 = vmatpush1.msra.mxu0 0.0
      %426 = vmatprep.subr.mxu0 0.0
      %427 = vmatpush1.msra.mxu0 0.0
      %428 = vmatprep.subr.mxu0 0.0
      %429 = vmatpush1.msra.mxu0 0.0
      %430 = vmatprep.subr.mxu0 0.0
      %431 = vmatpush1.msra.mxu0 0.0
      %432 = vmatprep.subr.mxu0 0.0
      %433 = vmatpush1.msra.mxu0 0.0
      %434 = vmatprep.subr.mxu0 0.0
      %435 = vmatpush1.msra.mxu0 0.0
      %436 = vmatprep.subr.mxu0 0.0
      %437 = vmatpush1.msra.mxu0 0.0
      %438 = vmatprep.subr.mxu0 0.0
      %439 = vmatpush1.msra.mxu0 0.0
      %440 = vmatprep.subr.mxu0 0.0
      %441 = vmatpush1.msra.mxu0 0.0
      %442 = vmatprep.subr.mxu0 0.0
      %443 = vmatpush1.msra.mxu0 0.0
      %444 = vmatprep.subr.mxu0 0.0
      %445 = vmatpush1.msra.mxu0 0.0
      %446 = vmatprep.subr.mxu0 0.0
      %447 = vmatpush1.msra.mxu0 0.0
      %448 = vmatprep.subr.mxu0 0.0
      %449 = vmatpush1.msra.mxu0 0.0
      %450 = vmatprep.subr.mxu0 0.0
      %451 = vmatpush1.msra.mxu0 0.0
      %452 = vmatprep.subr.mxu0 0.0
      %453 = vmatpush1.msra.mxu0 0.0
      %454 = vmatprep.subr.mxu0 0.0
      %455 = vmatpush1.msra.mxu0 0.0
      %456 = vmatprep.subr.mxu0 0.0
      %457 = vmatpush1.msra.mxu0 0.0
      %458 = vmatprep.subr.mxu0 0.0
      %459 = vmatpush1.msra.mxu0 0.0
      %460 = vmatprep.subr.mxu0 0.0
      %461 = vmatpush1.msra.mxu0 0.0
      %462 = vmatprep.subr.mxu0 0.0
      %463 = vmatpush1.msra.mxu0 0.0
      %464 = vmatprep.subr.mxu0 0.0
      %465 = vmatpush1.msra.mxu0 0.0
      %466 = vmatprep.subr.mxu0 0.0
      %467 = vmatpush1.msra.mxu0 0.0
      %468 = vmatprep.mubr.f32.mxu0 0.0
      %469 = vmatmul.mubr.f32.gmra.mrb[0].mxu0 %v402
      %v470 = vpop.f32.mrb[0].mxu0
      %v471 = vadd.f32 0.0, %v470
      %v472 = vpop.f32.mrb[0].mxu0
      %473 = vdwg.mxu0
      %v474 = vsub.f32 %v329, %v471
      %v475 = vld [vmem:[%s6] sm:$0x1]
      %vm476 = vcmp.eq.s32.totalorder %v224, 2
      %v477 = vmul.f32 %v474, %v474
      %478 = vadd.xlane.f32.xlu0 %v477
      %v479 = vpop.xlane.xlu0 %478
      %v480 = vrot.slane %v479, 4
      %v481 = vadd.f32 %v479, %v480
      %v482 = vrot.slane %v481, 2
      %v483 = vadd.f32 %v481, %v482
      %v484 = vrot.slane %v483, 1
      %v485 = vadd.f32 %v483, %v484
      %s486 = vtos %v485
      %v487 = vrcp.pop 1024.0
      %s488 = vtos %v487
      %s489 = smul.f32 %s486, %s488
      %s490 = smul.f32 %s489, 0.5
      %v491 = vstv %s490
      %v492 = vsel %vm476, %v491, 0.0
      %v493 = vadd.f32 %v475, %v492
      %494 = vst [vmem:[%s6] sm:$0x1] %v493
      // Predicated region
      $region41: #{_forward.1} parent=35 // pred_check
        %p495 = pneg %p138
      $region42: #{_forward.1} parent=35 // pred_check_branch
        %497 = sbr.rel (%p495) target = $region44
      $region43: #{_forward.1} parent=35 // pred_region
        _
      $region44: #{_forward.1} parent=35 // pred_fallthru
        _
      // Predicated region
      $region45: #{_forward.1} parent=35 // pred_check
        %p498 = pneg %p138
      $region46: #{_forward.1} parent=35 // pred_check_branch
        %500 = sbr.rel (%p498) target = $region48
      $region47: #{_forward.1} parent=35 // pred_region
        _
      $region48: #{_forward.1} parent=35 // pred_fallthru
        _
    $region36: #{_forward.1} parent=5 // pred_fallthru
      _
    %p501 = scmp.le.s32.totalorder 2, %s22
    // Predicated region
    $region49: #{_forward.1} parent=5 // pred_check
      %p502 = pneg %p501
    $region50: #{_forward.1} parent=5 // pred_check_branch
      %504 = sbr.rel (%p502) target = $region52
    $region51: #{_forward.1} parent=5 // pred_region
      %s505 = ssub.s32 %s22, 2
    $region52: #{_forward.1} parent=5 // pred_fallthru
      _
  $region6: #{_forward.1} parent=0 // loop_footer
    %s26 = sadd.s32 1, %s22
  $region7: #{_forward.1} parent=0 // loop_footer_branch
    %21 = sbr.rel target = $region3
  $region8: #{_forward.1} parent=0 // loop_exit
    _

</llo_original>
